<compile_context>
chip_gen: v5e
topology: v5e:2x2
jax: 0.10.0
libtpu: 0.0.40
codegen_flags: <defaults>
</compile_context>

<pallas_src>
import math

import jax
import jax.numpy as jnp
import numpy as np
from jax.experimental import pallas as pl
from jax.experimental.pallas import tpu as pltpu


def _round_up(x, m):
    return ((x + m - 1) // m) * m


def _gather_kernel(blk_ref, nvalid_ref, x_ref, sel_ref, o_ref, acc_ref):
    # grid = (row tiles [parallel], touched lane blocks [arbitrary/reduction])
    b = pl.program_id(1)

    @pl.when(b == 0)
    def _():
        acc_ref[...] = jnp.zeros_like(acc_ref)

    # Zero lanes past F in a partial trailing block: Pallas pads OOB block
    # reads with undefined data and garbage * 0.0 could be NaN otherwise.
    lane = jax.lax.broadcasted_iota(jnp.int32, x_ref.shape, 1)
    x = jnp.where(lane < nvalid_ref[b], x_ref[...], 0)

    # One-hot matmul gather: exact for finite float inputs (value * 1.0 + 0s).
    # TODO(synk): Inf/NaN sitting in *other* features of a touched 128-lane
    # block would contaminate outputs (0 * Inf = NaN), unlike a true gather.
    acc_ref[...] += jnp.dot(
        x,
        sel_ref[...],
        preferred_element_type=jnp.float32,
        precision=jax.lax.Precision.HIGHEST,
    )

    @pl.when(b == pl.num_programs(1) - 1)
    def _():
        o_ref[...] = acc_ref[...].astype(o_ref.dtype)


def indexing(x, indices, dim=-1, *, force_pallas=False, min_pallas_bytes=256 * 1024):
    """Pallas equivalent of Indexing(dim=-1, indices=indices)(x) == x[..., indices]."""
    if dim not in (-1, x.ndim - 1):
        raise NotImplementedError("only dim=-1 (last axis) is supported")
    lead_shape = x.shape[:-1]
    F = x.shape[-1]
    dtype = x.dtype

    # Normalize / validate the static index list (PyTorch allows negatives).
    idx = []
    for i in indices:
        i = int(i)
        if not (-F <= i < F):
            raise ValueError(f"index {i} out of bounds for axis of size {F}")
        idx.append(i % F)
    K = len(idx)
    if K == 0:
        return jnp.zeros(lead_shape + (0,), dtype)

    idx_arr = jnp.asarray(np.asarray(idx, dtype=np.int32))
    M = int(math.prod(lead_shape))
    itemsize = jnp.dtype(dtype).itemsize

    def _xla_gather():
        return jnp.take(x, idx_arr, axis=-1)

    # TODO(synk): integer dtypes keep the XLA gather path (one-hot MXU gather
    # is float-only).
    if not jnp.issubdtype(dtype, jnp.floating):
        return _xla_gather()
    if M < 8:
        return _xla_gather()
    if not force_pallas and M * F * itemsize < min_pallas_bytes:
        # Tiny problem: pallas_call launch overhead dwarfs the data movement.
        return _xla_gather()

    # ---- Static gather plan: only the 128-lane column blocks actually touched
    # by the indices are ever DMA'd from HBM. ---------------------------------
    blk_w = 128 if F >= 128 else F
    blocks = sorted({i // blk_w for i in idx})
    nb = len(blocks)
    block_pos = {c: p for p, c in enumerate(blocks)}

    k_pad = _round_up(K, 128)

    sel_np = np.zeros((nb * blk_w, k_pad), dtype=np.float32)
    for k, i in enumerate(idx):
        p = block_pos[i // blk_w]
        sel_np[p * blk_w + (i % blk_w), k] = 1.0
    sel = jnp.asarray(sel_np, dtype=dtype)

    blk = jnp.asarray(np.asarray(blocks, dtype=np.int32))
    nvalid = jnp.asarray(
        np.asarray([min(F - c * blk_w, blk_w) for c in blocks], dtype=np.int32)
    )

    # ---- Generation-aware VMEM budget & row-tile sizing ----------------------
    try:
        vmem_cap = int(pltpu.get_tpu_info().vmem_capacity_bytes)
    except Exception:
        vmem_cap = 64 * 1024 * 1024            # v7x floor; safe everywhere
    budget = vmem_cap // 2                      # ~32 MiB (v7x) / ~64 MiB (v5e/v6e)
    vmem_limit = int(min(vmem_cap, budget + budget // 2))

    sel_bytes = 2 * blk_w * k_pad * itemsize            # double-buffered sel tile
    per_row = 2 * blk_w * itemsize + 2 * k_pad * itemsize + 4 * k_pad
    tm = ((budget - sel_bytes) // per_row) // 8 * 8
    if tm < 8:
        # Selection matrix / output tile outgrow the VMEM budget (huge K).
        # TODO(synk): tile K with a third grid axis instead of falling back.
        return _xla_gather()
    tm = min(tm, _round_up(M, 8))
    # Keep several row tiles in flight: DMA/compute overlap everywhere, and on
    # v7x both TensorCores get work along the "parallel" row axis.
    target_steps = 8
    if M > target_steps * 512:
        tm = min(tm, _round_up(-(-M // target_steps), 8))

    x2d = jnp.reshape(x, (M, F))                # leading-dim collapse: no copy

    out = pl.pallas_call(
        _gather_kernel,
        out_shape=jax.ShapeDtypeStruct((M, k_pad), dtype),
        grid_spec=pltpu.PrefetchScalarGridSpec(
            num_scalar_prefetch=2,
            grid=(pl.cdiv(M, tm), nb),
            in_specs=[
                # x: data-dependent column block -> untouched features never read.
                pl.BlockSpec((tm, blk_w), lambda m, b, blk_s, nv_s: (m, blk_s[b])),
                pl.BlockSpec((blk_w, k_pad), lambda m, b, blk_s, nv_s: (b, 0)),
            ],
            out_specs=pl.BlockSpec((tm, k_pad), lambda m, b, blk_s, nv_s: (m, 0)),
            scratch_shapes=[pltpu.VMEM((tm, k_pad), jnp.float32)],
        ),
        compiler_params=pltpu.CompilerParams(
            dimension_semantics=("parallel", "arbitrary"),
            vmem_limit_bytes=vmem_limit,
        ),
    )(blk, nvalid, x2d, sel)

    return jnp.reshape(out[:, :K], lead_shape + (K,))


if __name__ == "__main__":
    key = jax.random.PRNGKey(0)
    # batch=2, channels=4, seq=16, features=384 (three 128-lane blocks; the
    # indices touch blocks 0 and 2 only, so block 1 of x is never DMA'd).
    x = jax.random.normal(key, (2, 4, 16, 384), dtype=jnp.float32)
    indices = [0, 3, 127, 256, 300, 383, -1, 7]   # includes a negative index

    out = jax.block_until_ready(indexing(x, indices, force_pallas=True))

    norm = jnp.asarray([i % x.shape[-1] for i in indices])
    ref = x[..., norm]
    assert out.shape == ref.shape, (out.shape, ref.shape)
    assert jnp.array_equal(out, ref), "pallas gather mismatch vs reference"

    # Tiny-problem auto path (falls back to XLA's native gather).
    x_small = jax.random.normal(jax.random.PRNGKey(1), (2, 4, 16), dtype=jnp.float32)
    out_small = jax.block_until_ready(indexing(x_small, [1, -2, 0]))
    ref_small = x_small[..., jnp.asarray([1, 14, 0])]
    assert jnp.array_equal(out_small, ref_small), "fallback path mismatch"

    print("KERNEL_OK")
</pallas_src>

<mosaic_0001>
module attributes {stable_mosaic.version = 11 : i64} {
  func.func @_gather_kernel(%arg0: i32, %arg1: i32, %arg2: memref<2xi32, #tpu.memory_space<smem>>, %arg3: memref<2xi32, #tpu.memory_space<smem>>, %arg4: memref<128x128xf32, #tpu.memory_space<vmem>>, %arg5: memref<128x128xf32, #tpu.memory_space<vmem>>, %arg6: memref<128x128xf32, #tpu.memory_space<vmem>>, %arg7: memref<128x128xf32, #tpu.memory_space<vmem>>) attributes {dimension_semantics = [#tpu.dimension_semantics<parallel>, #tpu.dimension_semantics<arbitrary>], iteration_bounds = array<i64: 1, 2>, scalar_prefetch = 2 : i64, scratch_operands = 1 : i64, tpu.core_type = #tpu.core_type<tc>, window_params = [{transform_indices = @transform_0, window_bounds = array<i64: 128, 128>}, {transform_indices = @transform_1, window_bounds = array<i64: 128, 128>}, {transform_indices = @transform_2, window_bounds = array<i64: 128, 128>}]} {
    %c0_i32 = arith.constant 0 : i32
    %0 = arith.cmpi eq, %arg1, %c0_i32 : i32
    %1 = arith.extui %0 : i1 to i32
    %c0_i32_0 = arith.constant 0 : i32
    %2 = arith.cmpi ne, %1, %c0_i32_0 : i32
    scf.if %2 {
      %cst_10 = arith.constant 0.000000e+00 : f32
      %20 = vector.broadcast %cst_10 : f32 to vector<128x128xf32>
      %c0_11 = arith.constant 0 : index
      %c0_12 = arith.constant 0 : index
      %21 = vector.load %arg7[%c0_11, %c0_12] : memref<128x128xf32, #tpu.memory_space<vmem>>, vector<128x128xf32>
      tpu.vector_store %arg7[%c0_11, %c0_12], %20 {strides = array<i32>} : memref<128x128xf32, #tpu.memory_space<vmem>>, vector<128x128xf32>,
    } else {
    }
    %3 = tpu.iota {dimensions = array<i32: 1>} : vector<128x128xi32>
    %4 = arith.index_cast %arg1 : i32 to index
    %5 = memref.load %arg3[%4] : memref<2xi32, #tpu.memory_space<smem>>
    %6 = vector.broadcast %5 : i32 to vector<128x128xi32>
    %7 = arith.cmpi slt, %3, %6 : vector<128x128xi32>
    %c0 = arith.constant 0 : index
    %c0_1 = arith.constant 0 : index
    %8 = vector.load %arg4[%c0, %c0_1] : memref<128x128xf32, #tpu.memory_space<vmem>>, vector<128x128xf32>
    %c0_i32_2 = arith.constant 0 : i32
    %9 = arith.sitofp %c0_i32_2 : i32 to f32
    %10 = vector.broadcast %9 : f32 to vector<128x128xf32>
    %11 = arith.select %7, %8, %10 : vector<128x128xi1>, vector<128x128xf32>
    %c0_3 = arith.constant 0 : index
    %c0_4 = arith.constant 0 : index
    %12 = vector.load %arg7[%c0_3, %c0_4] : memref<128x128xf32, #tpu.memory_space<vmem>>, vector<128x128xf32>
    %c0_5 = arith.constant 0 : index
    %c0_6 = arith.constant 0 : index
    %13 = vector.load %arg5[%c0_5, %c0_6] : memref<128x128xf32, #tpu.memory_space<vmem>>, vector<128x128xf32>
    %cst = arith.constant dense<0.000000e+00> : vector<128x128xf32>
    %14 = tpu.matmul %11, %13, %cst {dimension_numbers = #tpu.dot_dimension_numbers<[1], [0], [0], [1], [0, 0, 1, 1], [], []>, precision = #tpu.contract_precision<fp32>} : vector<128x128xf32>, vector<128x128xf32>, vector<128x128xf32> -> vector<128x128xf32>
    %15 = arith.addf %12, %14 : vector<128x128xf32>
    %c0_7 = arith.constant 0 : index
    %c0_8 = arith.constant 0 : index
    %16 = vector.load %arg7[%c0_7, %c0_8] : memref<128x128xf32, #tpu.memory_space<vmem>>, vector<128x128xf32>
    tpu.vector_store %arg7[%c0_7, %c0_8], %15 {strides = array<i32>} : memref<128x128xf32, #tpu.memory_space<vmem>>, vector<128x128xf32>,
    %c1_i32 = arith.constant 1 : i32
    %17 = arith.cmpi eq, %arg1, %c1_i32 : i32
    %18 = arith.extui %17 : i1 to i32
    %c0_i32_9 = arith.constant 0 : i32
    %19 = arith.cmpi ne, %18, %c0_i32_9 : i32
    scf.if %19 {
      %c0_10 = arith.constant 0 : index
      %c0_11 = arith.constant 0 : index
      %20 = vector.load %arg7[%c0_10, %c0_11] : memref<128x128xf32, #tpu.memory_space<vmem>>, vector<128x128xf32>
      %c0_12 = arith.constant 0 : index
      %c0_13 = arith.constant 0 : index
      %21 = vector.load %arg6[%c0_12, %c0_13] : memref<128x128xf32, #tpu.memory_space<vmem>>, vector<128x128xf32>
      tpu.vector_store %arg6[%c0_12, %c0_13], %20 {strides = array<i32>} : memref<128x128xf32, #tpu.memory_space<vmem>>, vector<128x128xf32>,
    } else {
    }
    return
  }
  func.func @transform_0(%arg0: i32, %arg1: i32, %arg2: memref<2xi32, #tpu.memory_space<smem>>, %arg3: memref<2xi32, #tpu.memory_space<smem>>) -> (i32, i32) {
    %0 = arith.index_cast %arg1 : i32 to index
    %1 = memref.load %arg2[%0] : memref<2xi32, #tpu.memory_space<smem>>
    %c0_i32 = arith.constant 0 : i32
    return %arg0, %1 : i32, i32
  }
  func.func @transform_1(%arg0: i32, %arg1: i32, %arg2: memref<2xi32, #tpu.memory_space<smem>>, %arg3: memref<2xi32, #tpu.memory_space<smem>>) -> (i32, i32) {
    %c0_i32 = arith.constant 0 : i32
    %c0_i32_0 = arith.constant 0 : i32
    return %arg1, %c0_i32 : i32, i32
  }
  func.func @transform_2(%arg0: i32, %arg1: i32, %arg2: memref<2xi32, #tpu.memory_space<smem>>, %arg3: memref<2xi32, #tpu.memory_space<smem>>) -> (i32, i32) {
    %c0_i32 = arith.constant 0 : i32
    %c0_i32_0 = arith.constant 0 : i32
    return %arg0, %c0_i32 : i32, i32
  }
}

</mosaic_0001>

<llo_original>
// kernel: tpu_custom_call.1
$region0: #{tpu_custom_call.1}
  #allocation0 [shape = 'u32[]', space=smem, size = 0x4, offset = 0x4, fixed_abs, tag = 'smem constant byte address 0x4 - core index']
  #allocation1 [shape = 'u32[72,128]{1,0:T(1,128)}', space=vmem, size = 0x9000, scoped, tag = 'internal scratch']
  #allocation2 [shape = 'f32[128,128]{1,0:T(8,128)}', space=vmem, size = 0x10000, scoped, tag = 'scratch operand']
  #allocation3 [shape = 's32[1]{0}', space=sflag, size = 0x4, scoped, tag = 'scoped memory for tpu_custom_call.1']
  #allocation4 [shape = 'u8[512]{0}', space=smem, size = 0x200, scoped, tag = 'prefetched SMEM operand 0']
  #allocation5 [shape = 'u8[512]{0}', space=smem, size = 0x200, scoped, tag = 'prefetched SMEM operand 1']
  %s0 = inlined_call_operand.hbm [shape: s32[2], index: 0, kind: input, shape index: {}]
  %s1 = inlined_call_operand.hbm [shape: s32[2], index: 1, kind: input, shape index: {}]
  %s2 = inlined_call_operand.hbm [shape: f32[128,384], index: 2, kind: input, shape index: {}]
  %s3 = inlined_call_operand.hbm [shape: f32[256,128], index: 3, kind: input, shape index: {}]
  %s4 = inlined_call_operand.hbm [shape: f32[128,128], index: 4, kind: output, shape index: {}]
  %s5 = sld [smem:[#allocation0]]
  $region57: #{tpu_custom_call.1} parent=0
    _
  %s7 = ssub.s32 1, %s5
  %s8 = scalar_select 0, %s7, %s5
  %s10 = sshll.u32 %s0, 4
  %s11 = int_to_ptr.hbm [resolvable:$true] %s10
  %13 = dma.hbm_to_smem %s11, 16, [#allocation4], [#allocation3]
  %s15 = sshll.u32 %s1, 4
  %s16 = int_to_ptr.hbm [resolvable:$true] %s15
  %18 = dma.hbm_to_smem %s16, 16, [#allocation5], [#allocation3]
  %20 = dma.done [#allocation3], 32
  %21 = sfence
  $region1: #{tpu_custom_call.1} parent=0
    #allocation6 [shape = 'u8[131072]{0}', space=vmem, size = 0x20000, scoped, tag = 'input window, operand 2']
    #allocation7 [shape = 's32[2]{0}', space=sflag, size = 0x8, scoped, tag = 'scoped memory for tpu_custom_call.1']
    #allocation8 [shape = 's32[2]{0}', space=sflag, size = 0x8, scoped, tag = 'scoped memory for tpu_custom_call.1']
    #allocation9 [shape = 'u8[131072]{0}', space=vmem, size = 0x20000, scoped, tag = 'input window, operand 3']
    #allocation10 [shape = 's32[2]{0}', space=sflag, size = 0x8, scoped, tag = 'scoped memory for tpu_custom_call.1']
    #allocation11 [shape = 'u8[65536]{0}', space=vmem, size = 0x10000, scoped, tag = 'output window, operand 0, single buffered']
    %22 = vsyncpa [#allocation7], 0
    %s23 = scalar_lea.sflag [#allocation7], 1
    %24 = vsyncpa %s23, 0
    %25 = vsyncpa [#allocation10], 0
    %s26 = scalar_lea.sflag [#allocation10], 1
    %27 = vsyncpa %s26, 0
    %28 = vsyncpa [#allocation8], 0
    loop: start=0, step=1, limit=4
    $region2: #{tpu_custom_call.1} parent=1 // loop_pre_header
      _
    $region3: #{tpu_custom_call.1} parent=1 // loop_header
      %s30 = sphi 0, %s34
      %p31 = scmp.ge.s32.totalorder %s30, 4
      %s37 = sphi 0, %s49
      %s38 = sphi 0, %s45
      %s39 = sphi 0, %s37
      %s40 = sphi 0, %s38
      %s41 = sphi 0, %s39
      %s42 = sphi 0, %s40
      %s56 = sphi 0, %s58
      %s59 = sphi 0, %s56
      %s60 = sphi 0, %s59
      %s76 = sphi 0, %s60
      %s82 = sphi 0, %s84
      %s85 = sphi 0, %s82
      %s86 = sphi 0, %s85
      %s102 = sphi 0, %s86
      %s108 = sphi 0, %s110
      %s111 = sphi 0, %s108
      %s112 = sphi 0, %s111
      %s128 = sphi 0, %s112
    $region4: #{tpu_custom_call.1} parent=1 // loop_header_branch
      %33 = sbr.rel (%p31) target = $region8
    $region5: #{tpu_custom_call.1} parent=1 // loop_body
      %s35 = ssub.s32 %s30, 1
      %s36 = ssub.s32 %s30, 2
      %s43 = sadd.s32 1, %s38
      %p44 = scmp.ge.s32.totalorder %s43, 2
      %s45 = scalar_select %p44, 0, %s43
      %s46 = sadd.s32 1, %s37
      %s47 = scalar_select %p44, %s46, %s37
      %p48 = scmp.ge.s32.totalorder %s47, 1
      %s49 = scalar_select %p48, 0, %s47
      %s50 = sld [smem:[#allocation4 + %s38]]
      %s51 = sld [smem:[#allocation4 + %s45]]
      %s52 = ssub.s32 %s37, %s49
      %s53 = ssub.s32 %s50, %s51
      %s54 = sor.u32 %s52, %s53
      %p55 = scmp.eq.s32.totalorder %s54, 0
      %s57 = sadd.s32 %s56, 1
      %s58 = scalar_select %p55, %s56, %s57
      %p61 = pneg %p55
      %p62 = scmp.eq.s32.totalorder %s30, 1
      %p63 = por %p61, %p62
      %p64 = scmp.ne.s32.totalorder %s56, %s59
      %p65 = scmp.eq.s32.totalorder %s30, 0
      %p66 = por %p64, %p65
      %p67 = scmp.ne.s32.totalorder %s56, %s59
      %p68 = scmp.eq.s32.totalorder %s35, 1
      %p69 = por %p67, %p68
      %p70 = scmp.ne.s32.totalorder %s59, %s60
      %p71 = scmp.eq.s32.totalorder %s35, 0
      %p72 = por %p70, %p71
      %p73 = scmp.ne.s32.totalorder %s59, %s60
      %p74 = scmp.eq.s32.totalorder %s36, 1
      %p75 = por %p73, %p74
      %p77 = scmp.ne.s32.totalorder %s60, %s76
      %p78 = scmp.eq.s32.totalorder %s36, 0
      %p79 = por %p77, %p78
      %s80 = ssub.s32 %s38, %s45
      %p81 = scmp.eq.s32.totalorder %s80, 0
      %s83 = sadd.s32 %s82, 1
      %s84 = scalar_select %p81, %s82, %s83
      %p87 = pneg %p81
      %p88 = scmp.eq.s32.totalorder %s30, 1
      %p89 = por %p87, %p88
      %p90 = scmp.ne.s32.totalorder %s82, %s85
      %p91 = scmp.eq.s32.totalorder %s30, 0
      %p92 = por %p90, %p91
      %p93 = scmp.ne.s32.totalorder %s82, %s85
      %p94 = scmp.eq.s32.totalorder %s35, 1
      %p95 = por %p93, %p94
      %p96 = scmp.ne.s32.totalorder %s85, %s86
      %p97 = scmp.eq.s32.totalorder %s35, 0
      %p98 = por %p96, %p97
      %p99 = scmp.ne.s32.totalorder %s85, %s86
      %p100 = scmp.eq.s32.totalorder %s36, 1
      %p101 = por %p99, %p100
      %p103 = scmp.ne.s32.totalorder %s86, %s102
      %p104 = scmp.eq.s32.totalorder %s36, 0
      %p105 = por %p103, %p104
      %s106 = ssub.s32 %s37, %s49
      %p107 = scmp.eq.s32.totalorder %s106, 0
      %s109 = sadd.s32 %s108, 1
      %s110 = scalar_select %p107, %s108, %s109
      %p113 = pneg %p107
      %p114 = scmp.eq.s32.totalorder %s30, 1
      %p115 = por %p113, %p114
      %p116 = scmp.ne.s32.totalorder %s108, %s111
      %p117 = scmp.eq.s32.totalorder %s30, 0
      %p118 = por %p116, %p117
      %p119 = scmp.ne.s32.totalorder %s108, %s111
      %p120 = scmp.eq.s32.totalorder %s35, 1
      %p121 = por %p119, %p120
      %p122 = scmp.ne.s32.totalorder %s111, %s112
      %p123 = scmp.eq.s32.totalorder %s35, 0
      %p124 = por %p122, %p123
      %p125 = scmp.ne.s32.totalorder %s111, %s112
      %p126 = scmp.eq.s32.totalorder %s36, 1
      %p127 = por %p125, %p126
      %p129 = scmp.ne.s32.totalorder %s112, %s128
      %p130 = scmp.eq.s32.totalorder %s36, 0
      %p131 = por %p129, %p130
      %p132 = scmp.le.s32.totalorder 1, %s30
      %p133 = scmp.lt.s32.totalorder %s30, 3
      %p134 = pnand %p132, %p133
      %p135 = pneg %p134
      // Predicated region
      $region9: #{tpu_custom_call.1} parent=5 // pred_check
        _
      $region10: #{tpu_custom_call.1} parent=5 // pred_check_branch
        %137 = sbr.rel (%p134) target = $region12
      $region11: #{tpu_custom_call.1} parent=5 // pred_region
        %s138 = ssub.s32 %s30, 1
      $region12: #{tpu_custom_call.1} parent=5 // pred_fallthru
        _
      %p139 = scmp.lt.s32.totalorder %s30, 2
      // Predicated region
      $region13: #{tpu_custom_call.1} parent=5 // pred_check
        %p140 = pneg %p139
      $region14: #{tpu_custom_call.1} parent=5 // pred_check_branch
        %142 = sbr.rel (%p140) target = $region16
      $region15: #{tpu_custom_call.1} parent=5 // pred_region
        // Predicated region
        $region17: #{tpu_custom_call.1} parent=15 // pred_check
          %p143 = pneg %p66
        $region18: #{tpu_custom_call.1} parent=15 // pred_check_branch
          %145 = sbr.rel (%p143) target = $region20
        $region19: #{tpu_custom_call.1} parent=15 // pred_region
          %s146 = sand.u32 %s56, 1
          %s147 = scalar_lea.sflag [#allocation7], %s146
          %s148 = sand.u32 %s56, 1
          %s149 = smul.addr %s148, 128
          %s150 = scalar_lea.vmem [#allocation6], %s149
          %s151 = sld [smem:[#allocation4 + %s38]]
          %s152 = smul.u32 16, %s37
          %154 = vsyncadd %s147, 0
          %s155 = smul.addr %s152, 3
          %s156 = sadd.s32 %s151, %s155
          %s157 = smul.addr %s156, 8
          %s158 = scalar_lea.hbm %s2, %s157
          %s159 = sshll.u32 %s158, 4
          %s160 = int_to_ptr.hbm [resolvable:$true] %s159
          %s161 = sshll.u32 %s150, 4
          %s162 = int_to_ptr.vmem [resolvable:$true] %s161
          %167 = dma.hbm_to_vmem [thread:$0]  %s160, 2048, %s162, %s147, 384, 128, 8
        $region20: #{tpu_custom_call.1} parent=15 // pred_fallthru
          _
        // Predicated region
        $region21: #{tpu_custom_call.1} parent=15 // pred_check
          %p168 = pneg %p92
        $region22: #{tpu_custom_call.1} parent=15 // pred_check_branch
          %170 = sbr.rel (%p168) target = $region24
        $region23: #{tpu_custom_call.1} parent=15 // pred_region
          %s171 = sand.u32 %s82, 1
          %s172 = scalar_lea.sflag [#allocation10], %s171
          %s173 = sand.u32 %s82, 1
          %s174 = smul.addr %s173, 128
          %s175 = scalar_lea.vmem [#allocation9], %s174
          %s176 = smul.u32 16, %s38
          %178 = vsyncadd %s172, 0
          %s179 = smul.addr %s176, 8
          %s180 = scalar_lea.hbm %s3, %s179
          %s181 = sshll.u32 %s180, 4
          %s182 = int_to_ptr.hbm [resolvable:$true] %s181
          %s183 = sshll.u32 %s175, 4
          %s184 = int_to_ptr.vmem [resolvable:$true] %s183
          %189 = dma.hbm_to_vmem [thread:$0]  %s182, 2048, %s184, %s172, 128, 128, 8
        $region24: #{tpu_custom_call.1} parent=15 // pred_fallthru
          _
      $region16: #{tpu_custom_call.1} parent=5 // pred_fallthru
        _
      %p190 = scmp.le.s32.totalorder 1, %s30
      %p191 = scmp.lt.s32.totalorder %s30, 3
      %p192 = pnand %p190, %p191
      %p193 = pneg %p192
      // Predicated region
      $region25: #{tpu_custom_call.1} parent=5 // pred_check
        _
      $region26: #{tpu_custom_call.1} parent=5 // pred_check_branch
        %195 = sbr.rel (%p192) target = $region28
      $region27: #{tpu_custom_call.1} parent=5 // pred_region
        %s196 = ssub.s32 %s30, 1
        %s197 = sand.u32 %s59, 1
        %s198 = scalar_lea.sflag [#allocation7], %s197
        %s199 = sand.u32 %s59, 1
        %s200 = smul.addr %s199, 128
        %s201 = scalar_lea.vmem [#allocation6], %s200
        // Predicated region
        $region29: #{tpu_custom_call.1} parent=27 // pred_check
          %p202 = pneg %p72
        $region30: #{tpu_custom_call.1} parent=27 // pred_check_branch
          %204 = sbr.rel (%p202) target = $region32
        $region31: #{tpu_custom_call.1} parent=27 // pred_region
          %206 = dma.done %s198, 2048
        $region32: #{tpu_custom_call.1} parent=27 // pred_fallthru
          _
        %s207 = sand.u32 %s85, 1
        %s208 = scalar_lea.sflag [#allocation10], %s207
        %s209 = sand.u32 %s85, 1
        %s210 = smul.addr %s209, 128
        %s211 = scalar_lea.vmem [#allocation9], %s210
        // Predicated region
        $region33: #{tpu_custom_call.1} parent=27 // pred_check
          %p212 = pneg %p98
        $region34: #{tpu_custom_call.1} parent=27 // pred_check_branch
          %214 = sbr.rel (%p212) target = $region36
        $region35: #{tpu_custom_call.1} parent=27 // pred_region
          %216 = dma.done %s208, 2048
        $region36: #{tpu_custom_call.1} parent=27 // pred_fallthru
          _
        %s217 = sand.u32 %s59, 1
        %s218 = scalar_lea.sflag [#allocation7], %s217
        %s219 = sand.u32 %s59, 1
        %s220 = smul.addr %s219, 128
        %s221 = scalar_lea.vmem [#allocation6], %s220
        %p222 = pneg %p72
        %p223 = pneg %p69
        %s224 = sand.u32 %s85, 1
        %s225 = scalar_lea.sflag [#allocation10], %s224
        %s226 = sand.u32 %s85, 1
        %s227 = smul.addr %s226, 128
        %s228 = scalar_lea.vmem [#allocation9], %s227
        %p229 = pneg %p98
        %p230 = pneg %p95
        %p231 = pneg %p124
        %p232 = pneg %p121
        %s233 = sld [smem:[#allocation4 + %s40]]
        %s234 = smul.u32 16, %s39
        %s235 = smul.u32 16, %s40
        %s236 = smul.u32 16, %s39
        %p237 = scmp.eq.s32.totalorder %s40, 0
        // Predicated region
        $region37: #{tpu_custom_call.1} parent=27 // pred_check
          %p238 = pneg %p237
        $region38: #{tpu_custom_call.1} parent=27 // pred_check_branch
          %240 = sbr.rel (%p238) target = $region40
        $region39: #{tpu_custom_call.1} parent=27 // pred_region
          %241 = vst [vmem:[#allocation2] sm:$0xff] 0.0
          %242 = vst [vmem:[#allocation2 + $0x8] sm:$0xff] 0.0
          %243 = vst [vmem:[#allocation2 + $0x10] sm:$0xff] 0.0
          %244 = vst [vmem:[#allocation2 + $0x18] sm:$0xff] 0.0
          %245 = vst [vmem:[#allocation2 + $0x20] sm:$0xff] 0.0
          %246 = vst [vmem:[#allocation2 + $0x28] sm:$0xff] 0.0
          %247 = vst [vmem:[#allocation2 + $0x30] sm:$0xff] 0.0
          %248 = vst [vmem:[#allocation2 + $0x38] sm:$0xff] 0.0
          %249 = vst [vmem:[#allocation2 + $0x40] sm:$0xff] 0.0
          %250 = vst [vmem:[#allocation2 + $0x48] sm:$0xff] 0.0
          %251 = vst [vmem:[#allocation2 + $0x50] sm:$0xff] 0.0
          %252 = vst [vmem:[#allocation2 + $0x58] sm:$0xff] 0.0
          %253 = vst [vmem:[#allocation2 + $0x60] sm:$0xff] 0.0
          %254 = vst [vmem:[#allocation2 + $0x68] sm:$0xff] 0.0
          %255 = vst [vmem:[#allocation2 + $0x70] sm:$0xff] 0.0
          %256 = vst [vmem:[#allocation2 + $0x78] sm:$0xff] 0.0
        $region40: #{tpu_custom_call.1} parent=27 // pred_fallthru
          _
        %v257 = vlaneseq
        %v258 = vand.u32 %v257, 127
        %s259 = sld [smem:[#allocation5 + %s40]]
        %v260 = vstv %s259
        %vm261 = vcmp.lt.s32.totalorder %v258, %v260
        %v262 = vld [vmem:[%s201] sm:$0xff]
        %v263 = vld [vmem:[%s201 + $0x8] sm:$0xff]
        %v264 = vld [vmem:[%s201 + $0x10] sm:$0xff]
        %v265 = vld [vmem:[%s201 + $0x18] sm:$0xff]
        %v266 = vld [vmem:[%s201 + $0x20] sm:$0xff]
        %v267 = vld [vmem:[%s201 + $0x28] sm:$0xff]
        %v268 = vld [vmem:[%s201 + $0x30] sm:$0xff]
        %v269 = vld [vmem:[%s201 + $0x38] sm:$0xff]
        %v270 = vld [vmem:[%s201 + $0x40] sm:$0xff]
        %v271 = vld [vmem:[%s201 + $0x48] sm:$0xff]
        %v272 = vld [vmem:[%s201 + $0x50] sm:$0xff]
        %v273 = vld [vmem:[%s201 + $0x58] sm:$0xff]
        %v274 = vld [vmem:[%s201 + $0x60] sm:$0xff]
        %v275 = vld [vmem:[%s201 + $0x68] sm:$0xff]
        %v276 = vld [vmem:[%s201 + $0x70] sm:$0xff]
        %v277 = vld [vmem:[%s201 + $0x78] sm:$0xff]
        %v278 = vsel %vm261, %v262, 0.0
        %v279 = vsel %vm261, %v263, 0.0
        %v280 = vsel %vm261, %v264, 0.0
        %v281 = vsel %vm261, %v265, 0.0
        %v282 = vsel %vm261, %v266, 0.0
        %v283 = vsel %vm261, %v267, 0.0
        %v284 = vsel %vm261, %v268, 0.0
        %v285 = vsel %vm261, %v269, 0.0
        %v286 = vsel %vm261, %v270, 0.0
        %v287 = vsel %vm261, %v271, 0.0
        %v288 = vsel %vm261, %v272, 0.0
        %v289 = vsel %vm261, %v273, 0.0
        %v290 = vsel %vm261, %v274, 0.0
        %v291 = vsel %vm261, %v275, 0.0
        %v292 = vsel %vm261, %v276, 0.0
        %v293 = vsel %vm261, %v277, 0.0
        %v294 = vld [vmem:[#allocation2] sm:$0xff]
        %v295 = vld [vmem:[#allocation2 + $0x8] sm:$0xff]
        %v296 = vld [vmem:[#allocation2 + $0x10] sm:$0xff]
        %v297 = vld [vmem:[#allocation2 + $0x18] sm:$0xff]
        %v298 = vld [vmem:[#allocation2 + $0x20] sm:$0xff]
        %v299 = vld [vmem:[#allocation2 + $0x28] sm:$0xff]
        %v300 = vld [vmem:[#allocation2 + $0x30] sm:$0xff]
        %v301 = vld [vmem:[#allocation2 + $0x38] sm:$0xff]
        %v302 = vld [vmem:[#allocation2 + $0x40] sm:$0xff]
        %v303 = vld [vmem:[#allocation2 + $0x48] sm:$0xff]
        %v304 = vld [vmem:[#allocation2 + $0x50] sm:$0xff]
        %v305 = vld [vmem:[#allocation2 + $0x58] sm:$0xff]
        %v306 = vld [vmem:[#allocation2 + $0x60] sm:$0xff]
        %v307 = vld [vmem:[#allocation2 + $0x68] sm:$0xff]
        %v308 = vld [vmem:[#allocation2 + $0x70] sm:$0xff]
        %v309 = vld [vmem:[#allocation2 + $0x78] sm:$0xff]
        %v310 = vld [vmem:[%s211] sm:$0xff]
        %v311 = vld [vmem:[%s211 + $0x8] sm:$0xff]
        %v312 = vld [vmem:[%s211 + $0x10] sm:$0xff]
        %v313 = vld [vmem:[%s211 + $0x18] sm:$0xff]
        %v314 = vld [vmem:[%s211 + $0x20] sm:$0xff]
        %v315 = vld [vmem:[%s211 + $0x28] sm:$0xff]
        %v316 = vld [vmem:[%s211 + $0x30] sm:$0xff]
        %v317 = vld [vmem:[%s211 + $0x38] sm:$0xff]
        %v318 = vld [vmem:[%s211 + $0x40] sm:$0xff]
        %v319 = vld [vmem:[%s211 + $0x48] sm:$0xff]
        %v320 = vld [vmem:[%s211 + $0x50] sm:$0xff]
        %v321 = vld [vmem:[%s211 + $0x58] sm:$0xff]
        %v322 = vld [vmem:[%s211 + $0x60] sm:$0xff]
        %v323 = vld [vmem:[%s211 + $0x68] sm:$0xff]
        %v324 = vld [vmem:[%s211 + $0x70] sm:$0xff]
        %v325 = vld [vmem:[%s211 + $0x78] sm:$0xff]
        %v326 = vand.u32 %v325, 4294901760
        %327 = vmatpush.msra.mxu0 %v326
        %v328 = vand.u32 %v324, 4294901760
        %329 = vmatpush.msra.mxu0 %v328
        %v330 = vand.u32 %v323, 4294901760
        %331 = vmatpush.msra.mxu0 %v330
        %v332 = vand.u32 %v322, 4294901760
        %333 = vmatpush.msra.mxu0 %v332
        %v334 = vand.u32 %v321, 4294901760
        %335 = vmatpush.msra.mxu0 %v334
        %v336 = vand.u32 %v320, 4294901760
        %337 = vmatpush.msra.mxu0 %v336
        %v338 = vand.u32 %v319, 4294901760
        %339 = vmatpush.msra.mxu0 %v338
        %v340 = vand.u32 %v318, 4294901760
        %341 = vmatpush.msra.mxu0 %v340
        %v342 = vand.u32 %v317, 4294901760
        %343 = vmatpush.msra.mxu0 %v342
        %v344 = vand.u32 %v316, 4294901760
        %345 = vmatpush.msra.mxu0 %v344
        %v346 = vand.u32 %v315, 4294901760
        %347 = vmatpush.msra.mxu0 %v346
        %v348 = vand.u32 %v314, 4294901760
        %349 = vmatpush.msra.mxu0 %v348
        %v350 = vand.u32 %v313, 4294901760
        %351 = vmatpush.msra.mxu0 %v350
        %v352 = vand.u32 %v312, 4294901760
        %353 = vmatpush.msra.mxu0 %v352
        %v354 = vand.u32 %v311, 4294901760
        %355 = vmatpush.msra.mxu0 %v354
        %v356 = vand.u32 %v310, 4294901760
        %357 = vmatpush.msra.mxu0 %v356
        %v358 = vand.u32 %v278, 4294901760
        %v359 = vsub.f32 %v278, %v358
        %v360 = vand.u32 %v359, 4294901760
        %v361 = vsub.f32 %v359, %v360
        %v362 = vand.u32 %v361, 4294901760
        %363 = vmatmul.f32.gmra.mxu0 %v362
        %v364 = vpop.f32.mrf.mxu0
        %v365 = vadd.f32 0.0, %v364
        %v366 = vand.u32 %v279, 4294901760
        %v367 = vsub.f32 %v279, %v366
        %v368 = vand.u32 %v367, 4294901760
        %v369 = vsub.f32 %v367, %v368
        %v370 = vand.u32 %v369, 4294901760
        %371 = vmatmul.f32.gmra.mxu0 %v370
        %v372 = vpop.f32.mrf.mxu0
        %v373 = vadd.f32 0.0, %v372
        %v374 = vand.u32 %v280, 4294901760
        %v375 = vsub.f32 %v280, %v374
        %v376 = vand.u32 %v375, 4294901760
        %v377 = vsub.f32 %v375, %v376
        %v378 = vand.u32 %v377, 4294901760
        %379 = vmatmul.f32.gmra.mxu0 %v378
        %v380 = vpop.f32.mrf.mxu0
        %v381 = vadd.f32 0.0, %v380
        %v382 = vand.u32 %v281, 4294901760
        %v383 = vsub.f32 %v281, %v382
        %v384 = vand.u32 %v383, 4294901760
        %v385 = vsub.f32 %v383, %v384
        %v386 = vand.u32 %v385, 4294901760
        %387 = vmatmul.f32.gmra.mxu0 %v386
        %v388 = vpop.f32.mrf.mxu0
        %v389 = vadd.f32 0.0, %v388
        %v390 = vand.u32 %v282, 4294901760
        %v391 = vsub.f32 %v282, %v390
        %v392 = vand.u32 %v391, 4294901760
        %v393 = vsub.f32 %v391, %v392
        %v394 = vand.u32 %v393, 4294901760
        %395 = vmatmul.f32.gmra.mxu0 %v394
        %v396 = vpop.f32.mrf.mxu0
        %v397 = vadd.f32 0.0, %v396
        %v398 = vand.u32 %v283, 4294901760
        %v399 = vsub.f32 %v283, %v398
        %v400 = vand.u32 %v399, 4294901760
        %v401 = vsub.f32 %v399, %v400
        %v402 = vand.u32 %v401, 4294901760
        %403 = vmatmul.f32.gmra.mxu0 %v402
        %v404 = vpop.f32.mrf.mxu0
        %v405 = vadd.f32 0.0, %v404
        %v406 = vand.u32 %v284, 4294901760
        %v407 = vsub.f32 %v284, %v406
        %v408 = vand.u32 %v407, 4294901760
        %v409 = vsub.f32 %v407, %v408
        %v410 = vand.u32 %v409, 4294901760
        %411 = vmatmul.f32.gmra.mxu0 %v410
        %v412 = vpop.f32.mrf.mxu0
        %v413 = vadd.f32 0.0, %v412
        %v414 = vand.u32 %v285, 4294901760
        %v415 = vsub.f32 %v285, %v414
        %v416 = vand.u32 %v415, 4294901760
        %v417 = vsub.f32 %v415, %v416
        %v418 = vand.u32 %v417, 4294901760
        %419 = vmatmul.f32.gmra.mxu0 %v418
        %v420 = vpop.f32.mrf.mxu0
        %v421 = vadd.f32 0.0, %v420
        %v422 = vand.u32 %v286, 4294901760
        %v423 = vsub.f32 %v286, %v422
        %v424 = vand.u32 %v423, 4294901760
        %v425 = vsub.f32 %v423, %v424
        %v426 = vand.u32 %v425, 4294901760
        %427 = vmatmul.f32.gmra.mxu0 %v426
        %v428 = vpop.f32.mrf.mxu0
        %v429 = vadd.f32 0.0, %v428
        %v430 = vand.u32 %v287, 4294901760
        %v431 = vsub.f32 %v287, %v430
        %v432 = vand.u32 %v431, 4294901760
        %v433 = vsub.f32 %v431, %v432
        %v434 = vand.u32 %v433, 4294901760
        %435 = vmatmul.f32.gmra.mxu0 %v434
        %v436 = vpop.f32.mrf.mxu0
        %v437 = vadd.f32 0.0, %v436
        %v438 = vand.u32 %v288, 4294901760
        %v439 = vsub.f32 %v288, %v438
        %v440 = vand.u32 %v439, 4294901760
        %v441 = vsub.f32 %v439, %v440
        %v442 = vand.u32 %v441, 4294901760
        %443 = vmatmul.f32.gmra.mxu0 %v442
        %v444 = vpop.f32.mrf.mxu0
        %v445 = vadd.f32 0.0, %v444
        %v446 = vand.u32 %v289, 4294901760
        %v447 = vsub.f32 %v289, %v446
        %v448 = vand.u32 %v447, 4294901760
        %v449 = vsub.f32 %v447, %v448
        %v450 = vand.u32 %v449, 4294901760
        %451 = vmatmul.f32.gmra.mxu0 %v450
        %v452 = vpop.f32.mrf.mxu0
        %v453 = vadd.f32 0.0, %v452
        %v454 = vand.u32 %v290, 4294901760
        %v455 = vsub.f32 %v290, %v454
        %v456 = vand.u32 %v455, 4294901760
        %v457 = vsub.f32 %v455, %v456
        %v458 = vand.u32 %v457, 4294901760
        %459 = vmatmul.f32.gmra.mxu0 %v458
        %v460 = vpop.f32.mrf.mxu0
        %v461 = vadd.f32 0.0, %v460
        %v462 = vand.u32 %v291, 4294901760
        %v463 = vsub.f32 %v291, %v462
        %v464 = vand.u32 %v463, 4294901760
        %v465 = vsub.f32 %v463, %v464
        %v466 = vand.u32 %v465, 4294901760
        %467 = vmatmul.f32.gmra.mxu0 %v466
        %v468 = vpop.f32.mrf.mxu0
        %v469 = vadd.f32 0.0, %v468
        %v470 = vand.u32 %v292, 4294901760
        %v471 = vsub.f32 %v292, %v470
        %v472 = vand.u32 %v471, 4294901760
        %v473 = vsub.f32 %v471, %v472
        %v474 = vand.u32 %v473, 4294901760
        %475 = vmatmul.f32.gmra.mxu0 %v474
        %v476 = vpop.f32.mrf.mxu0
        %v477 = vadd.f32 0.0, %v476
        %v478 = vand.u32 %v293, 4294901760
        %v479 = vsub.f32 %v293, %v478
        %v480 = vand.u32 %v479, 4294901760
        %v481 = vsub.f32 %v479, %v480
        %v482 = vand.u32 %v481, 4294901760
        %483 = vmatmul.f32.gmra.mxu0 %v482
        %v484 = vpop.f32.mrf.mxu0
        %v485 = vadd.f32 0.0, %v484
        %486 = vdwg.mxu0
        %v487 = vand.u32 %v325, 4294901760
        %v488 = vsub.f32 %v325, %v487
        %v489 = vand.u32 %v488, 4294901760
        %v490 = vsub.f32 %v488, %v489
        %v491 = vand.u32 %v490, 4294901760
        %492 = vmatpush.msra.mxu0 %v491
        %v493 = vand.u32 %v324, 4294901760
        %v494 = vsub.f32 %v324, %v493
        %v495 = vand.u32 %v494, 4294901760
        %v496 = vsub.f32 %v494, %v495
        %v497 = vand.u32 %v496, 4294901760
        %498 = vmatpush.msra.mxu0 %v497
        %v499 = vand.u32 %v323, 4294901760
        %v500 = vsub.f32 %v323, %v499
        %v501 = vand.u32 %v500, 4294901760
        %v502 = vsub.f32 %v500, %v501
        %v503 = vand.u32 %v502, 4294901760
        %504 = vmatpush.msra.mxu0 %v503
        %v505 = vand.u32 %v322, 4294901760
        %v506 = vsub.f32 %v322, %v505
        %v507 = vand.u32 %v506, 4294901760
        %v508 = vsub.f32 %v506, %v507
        %v509 = vand.u32 %v508, 4294901760
        %510 = vmatpush.msra.mxu0 %v509
        %v511 = vand.u32 %v321, 4294901760
        %v512 = vsub.f32 %v321, %v511
        %v513 = vand.u32 %v512, 4294901760
        %v514 = vsub.f32 %v512, %v513
        %v515 = vand.u32 %v514, 4294901760
        %516 = vmatpush.msra.mxu0 %v515
        %v517 = vand.u32 %v320, 4294901760
        %v518 = vsub.f32 %v320, %v517
        %v519 = vand.u32 %v518, 4294901760
        %v520 = vsub.f32 %v518, %v519
        %v521 = vand.u32 %v520, 4294901760
        %522 = vmatpush.msra.mxu0 %v521
        %v523 = vand.u32 %v319, 4294901760
        %v524 = vsub.f32 %v319, %v523
        %v525 = vand.u32 %v524, 4294901760
        %v526 = vsub.f32 %v524, %v525
        %v527 = vand.u32 %v526, 4294901760
        %528 = vmatpush.msra.mxu0 %v527
        %v529 = vand.u32 %v318, 4294901760
        %v530 = vsub.f32 %v318, %v529
        %v531 = vand.u32 %v530, 4294901760
        %v532 = vsub.f32 %v530, %v531
        %v533 = vand.u32 %v532, 4294901760
        %534 = vmatpush.msra.mxu0 %v533
        %v535 = vand.u32 %v317, 4294901760
        %v536 = vsub.f32 %v317, %v535
        %v537 = vand.u32 %v536, 4294901760
        %v538 = vsub.f32 %v536, %v537
        %v539 = vand.u32 %v538, 4294901760
        %540 = vmatpush.msra.mxu0 %v539
        %v541 = vand.u32 %v316, 4294901760
        %v542 = vsub.f32 %v316, %v541
        %v543 = vand.u32 %v542, 4294901760
        %v544 = vsub.f32 %v542, %v543
        %v545 = vand.u32 %v544, 4294901760
        %546 = vmatpush.msra.mxu0 %v545
        %v547 = vand.u32 %v315, 4294901760
        %v548 = vsub.f32 %v315, %v547
        %v549 = vand.u32 %v548, 4294901760
        %v550 = vsub.f32 %v548, %v549
        %v551 = vand.u32 %v550, 4294901760
        %552 = vmatpush.msra.mxu0 %v551
        %v553 = vand.u32 %v314, 4294901760
        %v554 = vsub.f32 %v314, %v553
        %v555 = vand.u32 %v554, 4294901760
        %v556 = vsub.f32 %v554, %v555
        %v557 = vand.u32 %v556, 4294901760
        %558 = vmatpush.msra.mxu0 %v557
        %v559 = vand.u32 %v313, 4294901760
        %v560 = vsub.f32 %v313, %v559
        %v561 = vand.u32 %v560, 4294901760
        %v562 = vsub.f32 %v560, %v561
        %v563 = vand.u32 %v562, 4294901760
        %564 = vmatpush.msra.mxu0 %v563
        %v565 = vand.u32 %v312, 4294901760
        %v566 = vsub.f32 %v312, %v565
        %v567 = vand.u32 %v566, 4294901760
        %v568 = vsub.f32 %v566, %v567
        %v569 = vand.u32 %v568, 4294901760
        %570 = vmatpush.msra.mxu0 %v569
        %v571 = vand.u32 %v311, 4294901760
        %v572 = vsub.f32 %v311, %v571
        %v573 = vand.u32 %v572, 4294901760
        %v574 = vsub.f32 %v572, %v573
        %v575 = vand.u32 %v574, 4294901760
        %576 = vmatpush.msra.mxu0 %v575
        %v577 = vand.u32 %v310, 4294901760
        %v578 = vsub.f32 %v310, %v577
        %v579 = vand.u32 %v578, 4294901760
        %v580 = vsub.f32 %v578, %v579
        %v581 = vand.u32 %v580, 4294901760
        %582 = vmatpush.msra.mxu0 %v581
        %v583 = vand.u32 %v278, 4294901760
        %584 = vmatmul.f32.gmra.mxu0 %v583
        %v585 = vpop.f32.mrf.mxu0
        %v586 = vadd.f32 %v365, %v585
        %v587 = vand.u32 %v279, 4294901760
        %588 = vmatmul.f32.gmra.mxu0 %v587
        %v589 = vpop.f32.mrf.mxu0
        %v590 = vadd.f32 %v373, %v589
        %v591 = vand.u32 %v280, 4294901760
        %592 = vmatmul.f32.gmra.mxu0 %v591
        %v593 = vpop.f32.mrf.mxu0
        %v594 = vadd.f32 %v381, %v593
        %v595 = vand.u32 %v281, 4294901760
        %596 = vmatmul.f32.gmra.mxu0 %v595
        %v597 = vpop.f32.mrf.mxu0
        %v598 = vadd.f32 %v389, %v597
        %v599 = vand.u32 %v282, 4294901760
        %600 = vmatmul.f32.gmra.mxu0 %v599
        %v601 = vpop.f32.mrf.mxu0
        %v602 = vadd.f32 %v397, %v601
        %v603 = vand.u32 %v283, 4294901760
        %604 = vmatmul.f32.gmra.mxu0 %v603
        %v605 = vpop.f32.mrf.mxu0
        %v606 = vadd.f32 %v405, %v605
        %v607 = vand.u32 %v284, 4294901760
        %608 = vmatmul.f32.gmra.mxu0 %v607
        %v609 = vpop.f32.mrf.mxu0
        %v610 = vadd.f32 %v413, %v609
        %v611 = vand.u32 %v285, 4294901760
        %612 = vmatmul.f32.gmra.mxu0 %v611
        %v613 = vpop.f32.mrf.mxu0
        %v614 = vadd.f32 %v421, %v613
        %v615 = vand.u32 %v286, 4294901760
        %616 = vmatmul.f32.gmra.mxu0 %v615
        %v617 = vpop.f32.mrf.mxu0
        %v618 = vadd.f32 %v429, %v617
        %v619 = vand.u32 %v287, 4294901760
        %620 = vmatmul.f32.gmra.mxu0 %v619
        %v621 = vpop.f32.mrf.mxu0
        %v622 = vadd.f32 %v437, %v621
        %v623 = vand.u32 %v288, 4294901760
        %624 = vmatmul.f32.gmra.mxu0 %v623
        %v625 = vpop.f32.mrf.mxu0
        %v626 = vadd.f32 %v445, %v625
        %v627 = vand.u32 %v289, 4294901760
        %628 = vmatmul.f32.gmra.mxu0 %v627
        %v629 = vpop.f32.mrf.mxu0
        %v630 = vadd.f32 %v453, %v629
        %v631 = vand.u32 %v290, 4294901760
        %632 = vmatmul.f32.gmra.mxu0 %v631
        %v633 = vpop.f32.mrf.mxu0
        %v634 = vadd.f32 %v461, %v633
        %v635 = vand.u32 %v291, 4294901760
        %636 = vmatmul.f32.gmra.mxu0 %v635
        %v637 = vpop.f32.mrf.mxu0
        %v638 = vadd.f32 %v469, %v637
        %v639 = vand.u32 %v292, 4294901760
        %640 = vmatmul.f32.gmra.mxu0 %v639
        %v641 = vpop.f32.mrf.mxu0
        %v642 = vadd.f32 %v477, %v641
        %v643 = vand.u32 %v293, 4294901760
        %644 = vmatmul.f32.gmra.mxu0 %v643
        %v645 = vpop.f32.mrf.mxu0
        %v646 = vadd.f32 %v485, %v645
        %647 = vdwg.mxu0
        %v648 = vand.u32 %v325, 4294901760
        %v649 = vsub.f32 %v325, %v648
        %650 = vmatpush.msra.mxu0 %v649
        %v651 = vand.u32 %v324, 4294901760
        %v652 = vsub.f32 %v324, %v651
        %653 = vmatpush.msra.mxu0 %v652
        %v654 = vand.u32 %v323, 4294901760
        %v655 = vsub.f32 %v323, %v654
        %656 = vmatpush.msra.mxu0 %v655
        %v657 = vand.u32 %v322, 4294901760
        %v658 = vsub.f32 %v322, %v657
        %659 = vmatpush.msra.mxu0 %v658
        %v660 = vand.u32 %v321, 4294901760
        %v661 = vsub.f32 %v321, %v660
        %662 = vmatpush.msra.mxu0 %v661
        %v663 = vand.u32 %v320, 4294901760
        %v664 = vsub.f32 %v320, %v663
        %665 = vmatpush.msra.mxu0 %v664
        %v666 = vand.u32 %v319, 4294901760
        %v667 = vsub.f32 %v319, %v666
        %668 = vmatpush.msra.mxu0 %v667
        %v669 = vand.u32 %v318, 4294901760
        %v670 = vsub.f32 %v318, %v669
        %671 = vmatpush.msra.mxu0 %v670
        %v672 = vand.u32 %v317, 4294901760
        %v673 = vsub.f32 %v317, %v672
        %674 = vmatpush.msra.mxu0 %v673
        %v675 = vand.u32 %v316, 4294901760
        %v676 = vsub.f32 %v316, %v675
        %677 = vmatpush.msra.mxu0 %v676
        %v678 = vand.u32 %v315, 4294901760
        %v679 = vsub.f32 %v315, %v678
        %680 = vmatpush.msra.mxu0 %v679
        %v681 = vand.u32 %v314, 4294901760
        %v682 = vsub.f32 %v314, %v681
        %683 = vmatpush.msra.mxu0 %v682
        %v684 = vand.u32 %v313, 4294901760
        %v685 = vsub.f32 %v313, %v684
        %686 = vmatpush.msra.mxu0 %v685
        %v687 = vand.u32 %v312, 4294901760
        %v688 = vsub.f32 %v312, %v687
        %689 = vmatpush.msra.mxu0 %v688
        %v690 = vand.u32 %v311, 4294901760
        %v691 = vsub.f32 %v311, %v690
        %692 = vmatpush.msra.mxu0 %v691
        %v693 = vand.u32 %v310, 4294901760
        %v694 = vsub.f32 %v310, %v693
        %695 = vmatpush.msra.mxu0 %v694
        %v696 = vand.u32 %v278, 4294901760
        %v697 = vsub.f32 %v278, %v696
        %698 = vmatmul.f32.gmra.mxu0 %v697
        %v699 = vpop.f32.mrf.mxu0
        %v700 = vadd.f32 %v586, %v699
        %v701 = vand.u32 %v279, 4294901760
        %v702 = vsub.f32 %v279, %v701
        %703 = vmatmul.f32.gmra.mxu0 %v702
        %v704 = vpop.f32.mrf.mxu0
        %v705 = vadd.f32 %v590, %v704
        %v706 = vand.u32 %v280, 4294901760
        %v707 = vsub.f32 %v280, %v706
        %708 = vmatmul.f32.gmra.mxu0 %v707
        %v709 = vpop.f32.mrf.mxu0
        %v710 = vadd.f32 %v594, %v709
        %v711 = vand.u32 %v281, 4294901760
        %v712 = vsub.f32 %v281, %v711
        %713 = vmatmul.f32.gmra.mxu0 %v712
        %v714 = vpop.f32.mrf.mxu0
        %v715 = vadd.f32 %v598, %v714
        %v716 = vand.u32 %v282, 4294901760
        %v717 = vsub.f32 %v282, %v716
        %718 = vmatmul.f32.gmra.mxu0 %v717
        %v719 = vpop.f32.mrf.mxu0
        %v720 = vadd.f32 %v602, %v719
        %v721 = vand.u32 %v283, 4294901760
        %v722 = vsub.f32 %v283, %v721
        %723 = vmatmul.f32.gmra.mxu0 %v722
        %v724 = vpop.f32.mrf.mxu0
        %v725 = vadd.f32 %v606, %v724
        %v726 = vand.u32 %v284, 4294901760
        %v727 = vsub.f32 %v284, %v726
        %728 = vmatmul.f32.gmra.mxu0 %v727
        %v729 = vpop.f32.mrf.mxu0
        %v730 = vadd.f32 %v610, %v729
        %v731 = vand.u32 %v285, 4294901760
        %v732 = vsub.f32 %v285, %v731
        %733 = vmatmul.f32.gmra.mxu0 %v732
        %v734 = vpop.f32.mrf.mxu0
        %v735 = vadd.f32 %v614, %v734
        %v736 = vand.u32 %v286, 4294901760
        %v737 = vsub.f32 %v286, %v736
        %738 = vmatmul.f32.gmra.mxu0 %v737
        %v739 = vpop.f32.mrf.mxu0
        %v740 = vadd.f32 %v618, %v739
        %v741 = vand.u32 %v287, 4294901760
        %v742 = vsub.f32 %v287, %v741
        %743 = vmatmul.f32.gmra.mxu0 %v742
        %v744 = vpop.f32.mrf.mxu0
        %v745 = vadd.f32 %v622, %v744
        %v746 = vand.u32 %v288, 4294901760
        %v747 = vsub.f32 %v288, %v746
        %748 = vmatmul.f32.gmra.mxu0 %v747
        %v749 = vpop.f32.mrf.mxu0
        %v750 = vadd.f32 %v626, %v749
        %v751 = vand.u32 %v289, 4294901760
        %v752 = vsub.f32 %v289, %v751
        %753 = vmatmul.f32.gmra.mxu0 %v752
        %v754 = vpop.f32.mrf.mxu0
        %v755 = vadd.f32 %v630, %v754
        %v756 = vand.u32 %v290, 4294901760
        %v757 = vsub.f32 %v290, %v756
        %758 = vmatmul.f32.gmra.mxu0 %v757
        %v759 = vpop.f32.mrf.mxu0
        %v760 = vadd.f32 %v634, %v759
        %v761 = vand.u32 %v291, 4294901760
        %v762 = vsub.f32 %v291, %v761
        %763 = vmatmul.f32.gmra.mxu0 %v762
        %v764 = vpop.f32.mrf.mxu0
        %v765 = vadd.f32 %v638, %v764
        %v766 = vand.u32 %v292, 4294901760
        %v767 = vsub.f32 %v292, %v766
        %768 = vmatmul.f32.gmra.mxu0 %v767
        %v769 = vpop.f32.mrf.mxu0
        %v770 = vadd.f32 %v642, %v769
        %v771 = vand.u32 %v293, 4294901760
        %v772 = vsub.f32 %v293, %v771
        %773 = vmatmul.f32.gmra.mxu0 %v772
        %v774 = vpop.f32.mrf.mxu0
        %v775 = vadd.f32 %v646, %v774
        %776 = vdwg.mxu0
        %v777 = vand.u32 %v325, 4294901760
        %778 = vmatpush.msra.mxu0 %v777
        %v779 = vand.u32 %v324, 4294901760
        %780 = vmatpush.msra.mxu0 %v779
        %v781 = vand.u32 %v323, 4294901760
        %782 = vmatpush.msra.mxu0 %v781
        %v783 = vand.u32 %v322, 4294901760
        %784 = vmatpush.msra.mxu0 %v783
        %v785 = vand.u32 %v321, 4294901760
        %786 = vmatpush.msra.mxu0 %v785
        %v787 = vand.u32 %v320, 4294901760
        %788 = vmatpush.msra.mxu0 %v787
        %v789 = vand.u32 %v319, 4294901760
        %790 = vmatpush.msra.mxu0 %v789
        %v791 = vand.u32 %v318, 4294901760
        %792 = vmatpush.msra.mxu0 %v791
        %v793 = vand.u32 %v317, 4294901760
        %794 = vmatpush.msra.mxu0 %v793
        %v795 = vand.u32 %v316, 4294901760
        %796 = vmatpush.msra.mxu0 %v795
        %v797 = vand.u32 %v315, 4294901760
        %798 = vmatpush.msra.mxu0 %v797
        %v799 = vand.u32 %v314, 4294901760
        %800 = vmatpush.msra.mxu0 %v799
        %v801 = vand.u32 %v313, 4294901760
        %802 = vmatpush.msra.mxu0 %v801
        %v803 = vand.u32 %v312, 4294901760
        %804 = vmatpush.msra.mxu0 %v803
        %v805 = vand.u32 %v311, 4294901760
        %806 = vmatpush.msra.mxu0 %v805
        %v807 = vand.u32 %v310, 4294901760
        %808 = vmatpush.msra.mxu0 %v807
        %v809 = vand.u32 %v278, 4294901760
        %v810 = vsub.f32 %v278, %v809
        %v811 = vand.u32 %v810, 4294901760
        %812 = vmatmul.f32.gmra.mxu0 %v811
        %v813 = vpop.f32.mrf.mxu0
        %v814 = vadd.f32 %v700, %v813
        %v815 = vand.u32 %v279, 4294901760
        %v816 = vsub.f32 %v279, %v815
        %v817 = vand.u32 %v816, 4294901760
        %818 = vmatmul.f32.gmra.mxu0 %v817
        %v819 = vpop.f32.mrf.mxu0
        %v820 = vadd.f32 %v705, %v819
        %v821 = vand.u32 %v280, 4294901760
        %v822 = vsub.f32 %v280, %v821
        %v823 = vand.u32 %v822, 4294901760
        %824 = vmatmul.f32.gmra.mxu0 %v823
        %v825 = vpop.f32.mrf.mxu0
        %v826 = vadd.f32 %v710, %v825
        %v827 = vand.u32 %v281, 4294901760
        %v828 = vsub.f32 %v281, %v827
        %v829 = vand.u32 %v828, 4294901760
        %830 = vmatmul.f32.gmra.mxu0 %v829
        %v831 = vpop.f32.mrf.mxu0
        %v832 = vadd.f32 %v715, %v831
        %v833 = vand.u32 %v282, 4294901760
        %v834 = vsub.f32 %v282, %v833
        %v835 = vand.u32 %v834, 4294901760
        %836 = vmatmul.f32.gmra.mxu0 %v835
        %v837 = vpop.f32.mrf.mxu0
        %v838 = vadd.f32 %v720, %v837
        %v839 = vand.u32 %v283, 4294901760
        %v840 = vsub.f32 %v283, %v839
        %v841 = vand.u32 %v840, 4294901760
        %842 = vmatmul.f32.gmra.mxu0 %v841
        %v843 = vpop.f32.mrf.mxu0
        %v844 = vadd.f32 %v725, %v843
        %v845 = vand.u32 %v284, 4294901760
        %v846 = vsub.f32 %v284, %v845
        %v847 = vand.u32 %v846, 4294901760
        %848 = vmatmul.f32.gmra.mxu0 %v847
        %v849 = vpop.f32.mrf.mxu0
        %v850 = vadd.f32 %v730, %v849
        %v851 = vand.u32 %v285, 4294901760
        %v852 = vsub.f32 %v285, %v851
        %v853 = vand.u32 %v852, 4294901760
        %854 = vmatmul.f32.gmra.mxu0 %v853
        %v855 = vpop.f32.mrf.mxu0
        %v856 = vadd.f32 %v735, %v855
        %v857 = vand.u32 %v286, 4294901760
        %v858 = vsub.f32 %v286, %v857
        %v859 = vand.u32 %v858, 4294901760
        %860 = vmatmul.f32.gmra.mxu0 %v859
        %v861 = vpop.f32.mrf.mxu0
        %v862 = vadd.f32 %v740, %v861
        %v863 = vand.u32 %v287, 4294901760
        %v864 = vsub.f32 %v287, %v863
        %v865 = vand.u32 %v864, 4294901760
        %866 = vmatmul.f32.gmra.mxu0 %v865
        %v867 = vpop.f32.mrf.mxu0
        %v868 = vadd.f32 %v745, %v867
        %v869 = vand.u32 %v288, 4294901760
        %v870 = vsub.f32 %v288, %v869
        %v871 = vand.u32 %v870, 4294901760
        %872 = vmatmul.f32.gmra.mxu0 %v871
        %v873 = vpop.f32.mrf.mxu0
        %v874 = vadd.f32 %v750, %v873
        %v875 = vand.u32 %v289, 4294901760
        %v876 = vsub.f32 %v289, %v875
        %v877 = vand.u32 %v876, 4294901760
        %878 = vmatmul.f32.gmra.mxu0 %v877
        %v879 = vpop.f32.mrf.mxu0
        %v880 = vadd.f32 %v755, %v879
        %v881 = vand.u32 %v290, 4294901760
        %v882 = vsub.f32 %v290, %v881
        %v883 = vand.u32 %v882, 4294901760
        %884 = vmatmul.f32.gmra.mxu0 %v883
        %v885 = vpop.f32.mrf.mxu0
        %v886 = vadd.f32 %v760, %v885
        %v887 = vand.u32 %v291, 4294901760
        %v888 = vsub.f32 %v291, %v887
        %v889 = vand.u32 %v888, 4294901760
        %890 = vmatmul.f32.gmra.mxu0 %v889
        %v891 = vpop.f32.mrf.mxu0
        %v892 = vadd.f32 %v765, %v891
        %v893 = vand.u32 %v292, 4294901760
        %v894 = vsub.f32 %v292, %v893
        %v895 = vand.u32 %v894, 4294901760
        %896 = vmatmul.f32.gmra.mxu0 %v895
        %v897 = vpop.f32.mrf.mxu0
        %v898 = vadd.f32 %v770, %v897
        %v899 = vand.u32 %v293, 4294901760
        %v900 = vsub.f32 %v293, %v899
        %v901 = vand.u32 %v900, 4294901760
        %902 = vmatmul.f32.gmra.mxu0 %v901
        %v903 = vpop.f32.mrf.mxu0
        %v904 = vadd.f32 %v775, %v903
        %905 = vdwg.mxu0
        %v906 = vand.u32 %v325, 4294901760
        %v907 = vsub.f32 %v325, %v906
        %v908 = vand.u32 %v907, 4294901760
        %909 = vmatpush.msra.mxu0 %v908
        %v910 = vand.u32 %v324, 4294901760
        %v911 = vsub.f32 %v324, %v910
        %v912 = vand.u32 %v911, 4294901760
        %913 = vmatpush.msra.mxu0 %v912
        %v914 = vand.u32 %v323, 4294901760
        %v915 = vsub.f32 %v323, %v914
        %v916 = vand.u32 %v915, 4294901760
        %917 = vmatpush.msra.mxu0 %v916
        %v918 = vand.u32 %v322, 4294901760
        %v919 = vsub.f32 %v322, %v918
        %v920 = vand.u32 %v919, 4294901760
        %921 = vmatpush.msra.mxu0 %v920
        %v922 = vand.u32 %v321, 4294901760
        %v923 = vsub.f32 %v321, %v922
        %v924 = vand.u32 %v923, 4294901760
        %925 = vmatpush.msra.mxu0 %v924
        %v926 = vand.u32 %v320, 4294901760
        %v927 = vsub.f32 %v320, %v926
        %v928 = vand.u32 %v927, 4294901760
        %929 = vmatpush.msra.mxu0 %v928
        %v930 = vand.u32 %v319, 4294901760
        %v931 = vsub.f32 %v319, %v930
        %v932 = vand.u32 %v931, 4294901760
        %933 = vmatpush.msra.mxu0 %v932
        %v934 = vand.u32 %v318, 4294901760
        %v935 = vsub.f32 %v318, %v934
        %v936 = vand.u32 %v935, 4294901760
        %937 = vmatpush.msra.mxu0 %v936
        %v938 = vand.u32 %v317, 4294901760
        %v939 = vsub.f32 %v317, %v938
        %v940 = vand.u32 %v939, 4294901760
        %941 = vmatpush.msra.mxu0 %v940
        %v942 = vand.u32 %v316, 4294901760
        %v943 = vsub.f32 %v316, %v942
        %v944 = vand.u32 %v943, 4294901760
        %945 = vmatpush.msra.mxu0 %v944
        %v946 = vand.u32 %v315, 4294901760
        %v947 = vsub.f32 %v315, %v946
        %v948 = vand.u32 %v947, 4294901760
        %949 = vmatpush.msra.mxu0 %v948
        %v950 = vand.u32 %v314, 4294901760
        %v951 = vsub.f32 %v314, %v950
        %v952 = vand.u32 %v951, 4294901760
        %953 = vmatpush.msra.mxu0 %v952
        %v954 = vand.u32 %v313, 4294901760
        %v955 = vsub.f32 %v313, %v954
        %v956 = vand.u32 %v955, 4294901760
        %957 = vmatpush.msra.mxu0 %v956
        %v958 = vand.u32 %v312, 4294901760
        %v959 = vsub.f32 %v312, %v958
        %v960 = vand.u32 %v959, 4294901760
        %961 = vmatpush.msra.mxu0 %v960
        %v962 = vand.u32 %v311, 4294901760
        %v963 = vsub.f32 %v311, %v962
        %v964 = vand.u32 %v963, 4294901760
        %965 = vmatpush.msra.mxu0 %v964
        %v966 = vand.u32 %v310, 4294901760
        %v967 = vsub.f32 %v310, %v966
        %v968 = vand.u32 %v967, 4294901760
        %969 = vmatpush.msra.mxu0 %v968
        %v970 = vand.u32 %v278, 4294901760
        %971 = vmatmul.f32.gmra.mxu0 %v970
        %v972 = vpop.f32.mrf.mxu0
        %v973 = vadd.f32 %v814, %v972
        %v974 = vand.u32 %v279, 4294901760
        %975 = vmatmul.f32.gmra.mxu0 %v974
        %v976 = vpop.f32.mrf.mxu0
        %v977 = vadd.f32 %v820, %v976
        %v978 = vand.u32 %v280, 4294901760
        %979 = vmatmul.f32.gmra.mxu0 %v978
        %v980 = vpop.f32.mrf.mxu0
        %v981 = vadd.f32 %v826, %v980
        %v982 = vand.u32 %v281, 4294901760
        %983 = vmatmul.f32.gmra.mxu0 %v982
        %v984 = vpop.f32.mrf.mxu0
        %v985 = vadd.f32 %v832, %v984
        %v986 = vand.u32 %v282, 4294901760
        %987 = vmatmul.f32.gmra.mxu0 %v986
        %v988 = vpop.f32.mrf.mxu0
        %v989 = vadd.f32 %v838, %v988
        %v990 = vand.u32 %v283, 4294901760
        %991 = vmatmul.f32.gmra.mxu0 %v990
        %v992 = vpop.f32.mrf.mxu0
        %v993 = vadd.f32 %v844, %v992
        %v994 = vand.u32 %v284, 4294901760
        %995 = vmatmul.f32.gmra.mxu0 %v994
        %v996 = vpop.f32.mrf.mxu0
        %v997 = vadd.f32 %v850, %v996
        %v998 = vand.u32 %v285, 4294901760
        %999 = vmatmul.f32.gmra.mxu0 %v998
        %v1000 = vpop.f32.mrf.mxu0
        %v1001 = vadd.f32 %v856, %v1000
        %v1002 = vand.u32 %v286, 4294901760
        %1003 = vmatmul.f32.gmra.mxu0 %v1002
        %v1004 = vpop.f32.mrf.mxu0
        %v1005 = vadd.f32 %v862, %v1004
        %v1006 = vand.u32 %v287, 4294901760
        %1007 = vmatmul.f32.gmra.mxu0 %v1006
        %v1008 = vpop.f32.mrf.mxu0
        %v1009 = vadd.f32 %v868, %v1008
        %v1010 = vand.u32 %v288, 4294901760
        %1011 = vmatmul.f32.gmra.mxu0 %v1010
        %v1012 = vpop.f32.mrf.mxu0
        %v1013 = vadd.f32 %v874, %v1012
        %v1014 = vand.u32 %v289, 4294901760
        %1015 = vmatmul.f32.gmra.mxu0 %v1014
        %v1016 = vpop.f32.mrf.mxu0
        %v1017 = vadd.f32 %v880, %v1016
        %v1018 = vand.u32 %v290, 4294901760
        %1019 = vmatmul.f32.gmra.mxu0 %v1018
        %v1020 = vpop.f32.mrf.mxu0
        %v1021 = vadd.f32 %v886, %v1020
        %v1022 = vand.u32 %v291, 4294901760
        %1023 = vmatmul.f32.gmra.mxu0 %v1022
        %v1024 = vpop.f32.mrf.mxu0
        %v1025 = vadd.f32 %v892, %v1024
        %v1026 = vand.u32 %v292, 4294901760
        %1027 = vmatmul.f32.gmra.mxu0 %v1026
        %v1028 = vpop.f32.mrf.mxu0
        %v1029 = vadd.f32 %v898, %v1028
        %v1030 = vand.u32 %v293, 4294901760
        %1031 = vmatmul.f32.gmra.mxu0 %v1030
        %v1032 = vpop.f32.mrf.mxu0
        %v1033 = vadd.f32 %v904, %v1032
        %1034 = vdwg.mxu0
        %v1035 = vand.u32 %v325, 4294901760
        %1036 = vmatpush.msra.mxu0 %v1035
        %v1037 = vand.u32 %v324, 4294901760
        %1038 = vmatpush.msra.mxu0 %v1037
        %v1039 = vand.u32 %v323, 4294901760
        %1040 = vmatpush.msra.mxu0 %v1039
        %v1041 = vand.u32 %v322, 4294901760
        %1042 = vmatpush.msra.mxu0 %v1041
        %v1043 = vand.u32 %v321, 4294901760
        %1044 = vmatpush.msra.mxu0 %v1043
        %v1045 = vand.u32 %v320, 4294901760
        %1046 = vmatpush.msra.mxu0 %v1045
        %v1047 = vand.u32 %v319, 4294901760
        %1048 = vmatpush.msra.mxu0 %v1047
        %v1049 = vand.u32 %v318, 4294901760
        %1050 = vmatpush.msra.mxu0 %v1049
        %v1051 = vand.u32 %v317, 4294901760
        %1052 = vmatpush.msra.mxu0 %v1051
        %v1053 = vand.u32 %v316, 4294901760
        %1054 = vmatpush.msra.mxu0 %v1053
        %v1055 = vand.u32 %v315, 4294901760
        %1056 = vmatpush.msra.mxu0 %v1055
        %v1057 = vand.u32 %v314, 4294901760
        %1058 = vmatpush.msra.mxu0 %v1057
        %v1059 = vand.u32 %v313, 4294901760
        %1060 = vmatpush.msra.mxu0 %v1059
        %v1061 = vand.u32 %v312, 4294901760
        %1062 = vmatpush.msra.mxu0 %v1061
        %v1063 = vand.u32 %v311, 4294901760
        %1064 = vmatpush.msra.mxu0 %v1063
        %v1065 = vand.u32 %v310, 4294901760
        %1066 = vmatpush.msra.mxu0 %v1065
        %v1067 = vand.u32 %v278, 4294901760
        %1068 = vmatmul.f32.gmra.mxu0 %v1067
        %v1069 = vpop.f32.mrf.mxu0
        %v1070 = vadd.f32 %v973, %v1069
        %v1071 = vand.u32 %v279, 4294901760
        %1072 = vmatmul.f32.gmra.mxu0 %v1071
        %v1073 = vpop.f32.mrf.mxu0
        %v1074 = vadd.f32 %v977, %v1073
        %v1075 = vand.u32 %v280, 4294901760
        %1076 = vmatmul.f32.gmra.mxu0 %v1075
        %v1077 = vpop.f32.mrf.mxu0
        %v1078 = vadd.f32 %v981, %v1077
        %v1079 = vand.u32 %v281, 4294901760
        %1080 = vmatmul.f32.gmra.mxu0 %v1079
        %v1081 = vpop.f32.mrf.mxu0
        %v1082 = vadd.f32 %v985, %v1081
        %v1083 = vand.u32 %v282, 4294901760
        %1084 = vmatmul.f32.gmra.mxu0 %v1083
        %v1085 = vpop.f32.mrf.mxu0
        %v1086 = vadd.f32 %v989, %v1085
        %v1087 = vand.u32 %v283, 4294901760
        %1088 = vmatmul.f32.gmra.mxu0 %v1087
        %v1089 = vpop.f32.mrf.mxu0
        %v1090 = vadd.f32 %v993, %v1089
        %v1091 = vand.u32 %v284, 4294901760
        %1092 = vmatmul.f32.gmra.mxu0 %v1091
        %v1093 = vpop.f32.mrf.mxu0
        %v1094 = vadd.f32 %v997, %v1093
        %v1095 = vand.u32 %v285, 4294901760
        %1096 = vmatmul.f32.gmra.mxu0 %v1095
        %v1097 = vpop.f32.mrf.mxu0
        %v1098 = vadd.f32 %v1001, %v1097
        %v1099 = vand.u32 %v286, 4294901760
        %1100 = vmatmul.f32.gmra.mxu0 %v1099
        %v1101 = vpop.f32.mrf.mxu0
        %v1102 = vadd.f32 %v1005, %v1101
        %v1103 = vand.u32 %v287, 4294901760
        %1104 = vmatmul.f32.gmra.mxu0 %v1103
        %v1105 = vpop.f32.mrf.mxu0
        %v1106 = vadd.f32 %v1009, %v1105
        %v1107 = vand.u32 %v288, 4294901760
        %1108 = vmatmul.f32.gmra.mxu0 %v1107
        %v1109 = vpop.f32.mrf.mxu0
        %v1110 = vadd.f32 %v1013, %v1109
        %v1111 = vand.u32 %v289, 4294901760
        %1112 = vmatmul.f32.gmra.mxu0 %v1111
        %v1113 = vpop.f32.mrf.mxu0
        %v1114 = vadd.f32 %v1017, %v1113
        %v1115 = vand.u32 %v290, 4294901760
        %1116 = vmatmul.f32.gmra.mxu0 %v1115
        %v1117 = vpop.f32.mrf.mxu0
        %v1118 = vadd.f32 %v1021, %v1117
        %v1119 = vand.u32 %v291, 4294901760
        %1120 = vmatmul.f32.gmra.mxu0 %v1119
        %v1121 = vpop.f32.mrf.mxu0
        %v1122 = vadd.f32 %v1025, %v1121
        %v1123 = vand.u32 %v292, 4294901760
        %1124 = vmatmul.f32.gmra.mxu0 %v1123
        %v1125 = vpop.f32.mrf.mxu0
        %v1126 = vadd.f32 %v1029, %v1125
        %v1127 = vand.u32 %v293, 4294901760
        %1128 = vmatmul.f32.gmra.mxu0 %v1127
        %v1129 = vpop.f32.mrf.mxu0
        %v1130 = vadd.f32 %v1033, %v1129
        %1131 = vdwg.mxu0
        %v1132 = vadd.f32 %v294, %v1070
        %v1133 = vadd.f32 %v295, %v1074
        %v1134 = vadd.f32 %v296, %v1078
        %v1135 = vadd.f32 %v297, %v1082
        %v1136 = vadd.f32 %v298, %v1086
        %v1137 = vadd.f32 %v299, %v1090
        %v1138 = vadd.f32 %v300, %v1094
        %v1139 = vadd.f32 %v301, %v1098
        %v1140 = vadd.f32 %v302, %v1102
        %v1141 = vadd.f32 %v303, %v1106
        %v1142 = vadd.f32 %v304, %v1110
        %v1143 = vadd.f32 %v305, %v1114
        %v1144 = vadd.f32 %v306, %v1118
        %v1145 = vadd.f32 %v307, %v1122
        %v1146 = vadd.f32 %v308, %v1126
        %v1147 = vadd.f32 %v309, %v1130
        %1148 = vst [vmem:[#allocation2] sm:$0xff] %v1132
        %1149 = vst [vmem:[#allocation2 + $0x8] sm:$0xff] %v1133
        %1150 = vst [vmem:[#allocation2 + $0x10] sm:$0xff] %v1134
        %1151 = vst [vmem:[#allocation2 + $0x18] sm:$0xff] %v1135
        %1152 = vst [vmem:[#allocation2 + $0x20] sm:$0xff] %v1136
        %1153 = vst [vmem:[#allocation2 + $0x28] sm:$0xff] %v1137
        %1154 = vst [vmem:[#allocation2 + $0x30] sm:$0xff] %v1138
        %1155 = vst [vmem:[#allocation2 + $0x38] sm:$0xff] %v1139
        %1156 = vst [vmem:[#allocation2 + $0x40] sm:$0xff] %v1140
        %1157 = vst [vmem:[#allocation2 + $0x48] sm:$0xff] %v1141
        %1158 = vst [vmem:[#allocation2 + $0x50] sm:$0xff] %v1142
        %1159 = vst [vmem:[#allocation2 + $0x58] sm:$0xff] %v1143
        %1160 = vst [vmem:[#allocation2 + $0x60] sm:$0xff] %v1144
        %1161 = vst [vmem:[#allocation2 + $0x68] sm:$0xff] %v1145
        %1162 = vst [vmem:[#allocation2 + $0x70] sm:$0xff] %v1146
        %1163 = vst [vmem:[#allocation2 + $0x78] sm:$0xff] %v1147
        %p1164 = scmp.eq.s32.totalorder %s40, 1
        // Predicated region
        $region41: #{tpu_custom_call.1} parent=27 // pred_check
          %p1165 = pneg %p1164
        $region42: #{tpu_custom_call.1} parent=27 // pred_check_branch
          %1167 = sbr.rel (%p1165) target = $region44
        $region43: #{tpu_custom_call.1} parent=27 // pred_region
          %v1168 = vld [vmem:[#allocation2] sm:$0xff]
          %v1169 = vld [vmem:[#allocation2 + $0x8] sm:$0xff]
          %v1170 = vld [vmem:[#allocation2 + $0x10] sm:$0xff]
          %v1171 = vld [vmem:[#allocation2 + $0x18] sm:$0xff]
          %v1172 = vld [vmem:[#allocation2 + $0x20] sm:$0xff]
          %v1173 = vld [vmem:[#allocation2 + $0x28] sm:$0xff]
          %v1174 = vld [vmem:[#allocation2 + $0x30] sm:$0xff]
          %v1175 = vld [vmem:[#allocation2 + $0x38] sm:$0xff]
          %v1176 = vld [vmem:[#allocation2 + $0x40] sm:$0xff]
          %v1177 = vld [vmem:[#allocation2 + $0x48] sm:$0xff]
          %v1178 = vld [vmem:[#allocation2 + $0x50] sm:$0xff]
          %v1179 = vld [vmem:[#allocation2 + $0x58] sm:$0xff]
          %v1180 = vld [vmem:[#allocation2 + $0x60] sm:$0xff]
          %v1181 = vld [vmem:[#allocation2 + $0x68] sm:$0xff]
          %v1182 = vld [vmem:[#allocation2 + $0x70] sm:$0xff]
          %v1183 = vld [vmem:[#allocation2 + $0x78] sm:$0xff]
          %1184 = vst [vmem:[#allocation11] sm:$0xff] %v1168
          %1185 = vst [vmem:[#allocation11 + $0x8] sm:$0xff] %v1169
          %1186 = vst [vmem:[#allocation11 + $0x10] sm:$0xff] %v1170
          %1187 = vst [vmem:[#allocation11 + $0x18] sm:$0xff] %v1171
          %1188 = vst [vmem:[#allocation11 + $0x20] sm:$0xff] %v1172
          %1189 = vst [vmem:[#allocation11 + $0x28] sm:$0xff] %v1173
          %1190 = vst [vmem:[#allocation11 + $0x30] sm:$0xff] %v1174
          %1191 = vst [vmem:[#allocation11 + $0x38] sm:$0xff] %v1175
          %1192 = vst [vmem:[#allocation11 + $0x40] sm:$0xff] %v1176
          %1193 = vst [vmem:[#allocation11 + $0x48] sm:$0xff] %v1177
          %1194 = vst [vmem:[#allocation11 + $0x50] sm:$0xff] %v1178
          %1195 = vst [vmem:[#allocation11 + $0x58] sm:$0xff] %v1179
          %1196 = vst [vmem:[#allocation11 + $0x60] sm:$0xff] %v1180
          %1197 = vst [vmem:[#allocation11 + $0x68] sm:$0xff] %v1181
          %1198 = vst [vmem:[#allocation11 + $0x70] sm:$0xff] %v1182
          %1199 = vst [vmem:[#allocation11 + $0x78] sm:$0xff] %v1183
        $region44: #{tpu_custom_call.1} parent=27 // pred_fallthru
          _
        // Predicated region
        $region45: #{tpu_custom_call.1} parent=27 // pred_check
          %p1200 = pneg %p121
        $region46: #{tpu_custom_call.1} parent=27 // pred_check_branch
          %1202 = sbr.rel (%p1200) target = $region48
        $region47: #{tpu_custom_call.1} parent=27 // pred_region
          %s1203 = smul.u32 16, %s39
          %1205 = vsyncadd [#allocation8], 0
          %s1206 = smul.addr %s1203, 8
          %s1207 = scalar_lea.hbm %s4, %s1206
          %s1208 = sshll.u32 [#allocation11], 4
          %s1209 = int_to_ptr.vmem [resolvable:$true] %s1208
          %s1210 = sshll.u32 %s1207, 4
          %s1211 = int_to_ptr.hbm [resolvable:$true] %s1210
          %1216 = dma.vmem_to_hbm [thread:$0]  %s1209, 2048, %s1211, [#allocation8], 128, 128, 8
        $region48: #{tpu_custom_call.1} parent=27 // pred_fallthru
          _
        // Predicated region
        $region49: #{tpu_custom_call.1} parent=27 // pred_check
          %p1217 = pneg %p121
        $region50: #{tpu_custom_call.1} parent=27 // pred_check_branch
          %1219 = sbr.rel (%p1217) target = $region52
        $region51: #{tpu_custom_call.1} parent=27 // pred_region
          %1221 = dma.done [#allocation8], 2048
        $region52: #{tpu_custom_call.1} parent=27 // pred_fallthru
          _
      $region28: #{tpu_custom_call.1} parent=5 // pred_fallthru
        _
      %p1222 = scmp.le.s32.totalorder 2, %s30
      // Predicated region
      $region53: #{tpu_custom_call.1} parent=5 // pred_check
        %p1223 = pneg %p1222
      $region54: #{tpu_custom_call.1} parent=5 // pred_check_branch
        %1225 = sbr.rel (%p1223) target = $region56
      $region55: #{tpu_custom_call.1} parent=5 // pred_region
        %s1226 = ssub.s32 %s30, 2
      $region56: #{tpu_custom_call.1} parent=5 // pred_fallthru
        _
    $region6: #{tpu_custom_call.1} parent=1 // loop_footer
      %s34 = sadd.s32 1, %s30
    $region7: #{tpu_custom_call.1} parent=1 // loop_footer_branch
      %29 = sbr.rel target = $region3
    $region8: #{tpu_custom_call.1} parent=1 // loop_exit
      _
    %1227 = vsyncpa [#allocation7], 1
    %s1228 = scalar_lea.sflag [#allocation7], 1
    %1229 = vsyncpa %s1228, 1
    %1230 = vsyncpa [#allocation10], 1
    %s1231 = scalar_lea.sflag [#allocation10], 1
    %1232 = vsyncpa %s1231, 1
    %1233 = vsyncpa [#allocation8], 1
    %s1234 = scalar_lea.sflag [#allocation8], 1
    %1235 = vsyncpa %s1234, 1

</llo_original>
